<compile_context>
chip_gen: v5e
topology: v5e:2x2
jax: 0.10.0
libtpu: 0.0.40
codegen_flags: <defaults>
</compile_context>

<pallas_src>
import jax
import jax.numpy as jnp
from jax import lax
from jax.experimental import pallas as pl
from jax.experimental.pallas import tpu as pltpu


def _ual_loss(sims, alpha):
    """Core math on in-VMEM tiles; reductions in f32 (inputs may be bf16)."""
    sims = sims.astype(jnp.float32)     # (BS, BS)
    alpha = alpha.astype(jnp.float32)   # (BS, K)
    bs = sims.shape[0]
    k = alpha.shape[1]

    # Zero the diagonal with a single select (no explicit float mask vreg).
    row = lax.broadcasted_iota(jnp.int32, (bs, bs), 0)
    col = lax.broadcasted_iota(jnp.int32, (bs, bs), 1)
    off_diag = jnp.where(row == col, 0.0, sims)

    # soft_label = (sims * (1-eye)).mean(axis=1, keepdims=True)  (divide by BS,
    # matching the PyTorch reference, not BS-1).
    soft_label = jnp.sum(off_diag, axis=1, keepdims=True) * jnp.float32(1.0 / bs)

    # U = K / S ;  1 - U   (exact reciprocal; approx=True -> EUP for large BS).
    s = jnp.sum(alpha, axis=1, keepdims=True)
    one_minus_u = 1.0 - jnp.float32(k) * pl.reciprocal(s, approx=False)

    # Global scale, then mean-squared error over the BS rows.
    scale = jnp.mean(one_minus_u) / jnp.mean(soft_label)
    diff = one_minus_u - scale * soft_label
    return jnp.mean(diff * diff)


def _ual_single_kernel(sims_ref, alpha_ref, out_ref):
    out_ref[0, 0] = _ual_loss(sims_ref[...], alpha_ref[...])


def _ual_batched_kernel(sims_ref, alpha_ref, out_ref):
    b = pl.program_id(0)
    out_ref[b, 0] = _ual_loss(sims_ref[0], alpha_ref[0])


def uncertainty_aware_loss(sims, alpha):
    """Pallas TPU implementation of UncertaintyAwareLoss.forward (one pair)."""
    bs, bs2 = sims.shape
    assert bs == bs2, "sims must be square (BS, BS)"
    _, k = alpha.shape

    out = pl.pallas_call(
        _ual_single_kernel,
        out_shape=jax.ShapeDtypeStruct((1, 1), jnp.float32),
        # No grid: whole (tiny) arrays resident in VMEM, scalar result in SMEM.
        in_specs=[
            pl.BlockSpec(memory_space=pltpu.VMEM),
            pl.BlockSpec(memory_space=pltpu.VMEM),
        ],
        out_specs=pl.BlockSpec(memory_space=pltpu.SMEM),
    )(sims, alpha)
    return out[0, 0]


def uncertainty_aware_loss_batched(sims_b, alpha_b):
    """B independent loss evaluations in one pallas_call (grid over batch)."""
    B, bs, bs2 = sims_b.shape
    assert bs == bs2, "sims must be square (B, BS, BS)"
    _, _, k = alpha_b.shape

    out = pl.pallas_call(
        _ual_batched_kernel,
        out_shape=jax.ShapeDtypeStruct((B, 1), jnp.float32),
        grid=(B,),
        in_specs=[
            pl.BlockSpec((1, bs, bs), lambda b: (b, 0, 0)),
            pl.BlockSpec((1, bs, k), lambda b: (b, 0, 0)),
        ],
        # Whole (B, 1) result stays resident in SMEM across the grid; each grid
        # step writes its own row.  Marked "arbitrary" because the output block
        # is shared across the batch axis; for very large B, switch to a per-
        # step (1, 1) output block so the axis can be marked "parallel" and
        # megacore-sharded.
        out_specs=pl.BlockSpec(memory_space=pltpu.SMEM),
        compiler_params=pltpu.CompilerParams(
            dimension_semantics=("arbitrary",)),
    )(sims_b, alpha_b)
    return out[:, 0]


def _reference(sims, alpha):
    """Pure-JAX reference mirroring the PyTorch forward exactly."""
    bs = sims.shape[0]
    k = alpha.shape[1]
    mask = 1.0 - jnp.eye(bs, dtype=sims.dtype)
    soft_label = jnp.mean(sims * mask, axis=1, keepdims=True)
    s = jnp.sum(alpha, axis=1, keepdims=True)
    u = k / s
    scale = jnp.mean(1.0 - u) / jnp.mean(soft_label)
    return jnp.mean((1.0 - u - scale * soft_label) ** 2)


if __name__ == "__main__":
    BS, K, B = 8, 32, 4  # small shapes consistent with the module's forward

    key = jax.random.PRNGKey(0)
    k1, k2, k3, k4 = jax.random.split(key, 4)

    # Single (sims, alpha) pair.
    sims = jax.random.uniform(k1, (BS, BS), dtype=jnp.float32)          # [0, 1)
    alpha = jax.random.uniform(k2, (BS, K), dtype=jnp.float32) * 4.0 + 1.0  # >= 1

    loss = jax.block_until_ready(uncertainty_aware_loss(sims, alpha))
    ref = jax.block_until_ready(_reference(sims, alpha))
    assert jnp.allclose(loss, ref, rtol=1e-5, atol=1e-6), (loss, ref)

    # Batched: B pairs evaluated in a single pallas_call.
    sims_b = jax.random.uniform(k3, (B, BS, BS), dtype=jnp.float32)
    alpha_b = jax.random.uniform(k4, (B, BS, K), dtype=jnp.float32) * 4.0 + 1.0

    loss_b = jax.block_until_ready(uncertainty_aware_loss_batched(sims_b, alpha_b))
    ref_b = jax.block_until_ready(jax.vmap(_reference)(sims_b, alpha_b))
    assert jnp.allclose(loss_b, ref_b, rtol=1e-5, atol=1e-6), (loss_b, ref_b)

    print("KERNEL_OK")
</pallas_src>

<mosaic_0001>
module attributes {stable_mosaic.version = 11 : i64} {
  func.func @_ual_single_kernel(%arg0: memref<8x8xf32, #tpu.memory_space<vmem>>, %arg1: memref<8x32xf32, #tpu.memory_space<vmem>>, %arg2: memref<1x1xf32, #tpu.memory_space<smem>>) attributes {dimension_semantics = [], scalar_prefetch = 0 : i64, scratch_operands = 0 : i64, tpu.core_type = #tpu.core_type<tc>} {
    %c0 = arith.constant 0 : index
    %c0_0 = arith.constant 0 : index
    %0 = vector.load %arg0[%c0, %c0_0] : memref<8x8xf32, #tpu.memory_space<vmem>>, vector<8x8xf32>
    %c0_1 = arith.constant 0 : index
    %c0_2 = arith.constant 0 : index
    %1 = vector.load %arg1[%c0_1, %c0_2] : memref<8x32xf32, #tpu.memory_space<vmem>>, vector<8x32xf32>
    %2 = tpu.iota {dimensions = array<i32: 0>} : vector<8x8xi32>
    %3 = tpu.iota {dimensions = array<i32: 1>} : vector<8x8xi32>
    %4 = arith.cmpi eq, %2, %3 : vector<8x8xi32>
    %cst = arith.constant 0.000000e+00 : f32
    %5 = vector.broadcast %cst : f32 to vector<8x8xf32>
    %6 = arith.select %4, %5, %0 : vector<8x8xi1>, vector<8x8xf32>
    %cst_3 = arith.constant dense<0.000000e+00> : vector<8xf32>
    %7 = vector.multi_reduction <add>, %6, %cst_3 [1] : vector<8x8xf32> to vector<8xf32>
    %8 = vector.shape_cast %7 : vector<8xf32> to vector<8x1xf32>
    %cst_4 = arith.constant 1.250000e-01 : f32
    %9 = vector.broadcast %cst_4 : f32 to vector<8x1xf32>
    %10 = arith.mulf %8, %9 : vector<8x1xf32>
    %cst_5 = arith.constant dense<0.000000e+00> : vector<8xf32>
    %11 = vector.multi_reduction <add>, %1, %cst_5 [1] : vector<8x32xf32> to vector<8xf32>
    %12 = vector.shape_cast %11 : vector<8xf32> to vector<8x1xf32>
    %13 = tpu.reciprocal %12 : vector<8x1xf32> -> vector<8x1xf32>
    %cst_6 = arith.constant 3.200000e+01 : f32
    %14 = vector.broadcast %cst_6 : f32 to vector<8x1xf32>
    %15 = arith.mulf %14, %13 : vector<8x1xf32>
    %cst_7 = arith.constant 1.000000e+00 : f32
    %16 = vector.broadcast %cst_7 : f32 to vector<8x1xf32>
    %17 = arith.subf %16, %15 : vector<8x1xf32>
    %18 = vector.shape_cast %17 : vector<8x1xf32> to vector<1x8x1xf32>
    %cst_8 = arith.constant dense<0.000000e+00> : vector<1xf32>
    %19 = vector.multi_reduction <add>, %18, %cst_8 [1, 2] : vector<1x8x1xf32> to vector<1xf32>
    %20 = vector.shape_cast %19 : vector<1xf32> to vector<1x1x1xf32>
    %21 = vector.extract %20[0, 0, 0] : f32 from vector<1x1x1xf32>
    %cst_9 = arith.constant 8.000000e+00 : f32
    %22 = arith.divf %21, %cst_9 : f32
    %23 = vector.shape_cast %10 : vector<8x1xf32> to vector<1x8x1xf32>
    %cst_10 = arith.constant dense<0.000000e+00> : vector<1xf32>
    %24 = vector.multi_reduction <add>, %23, %cst_10 [1, 2] : vector<1x8x1xf32> to vector<1xf32>
    %25 = vector.shape_cast %24 : vector<1xf32> to vector<1x1x1xf32>
    %26 = vector.extract %25[0, 0, 0] : f32 from vector<1x1x1xf32>
    %cst_11 = arith.constant 8.000000e+00 : f32
    %27 = arith.divf %26, %cst_11 : f32
    %28 = arith.divf %22, %27 : f32
    %29 = vector.broadcast %28 : f32 to vector<8x1xf32>
    %30 = arith.mulf %29, %10 : vector<8x1xf32>
    %31 = arith.subf %17, %30 : vector<8x1xf32>
    %32 = arith.mulf %31, %31 : vector<8x1xf32>
    %33 = vector.shape_cast %32 : vector<8x1xf32> to vector<1x8x1xf32>
    %cst_12 = arith.constant dense<0.000000e+00> : vector<1xf32>
    %34 = vector.multi_reduction <add>, %33, %cst_12 [1, 2] : vector<1x8x1xf32> to vector<1xf32>
    %35 = vector.shape_cast %34 : vector<1xf32> to vector<1x1x1xf32>
    %36 = vector.extract %35[0, 0, 0] : f32 from vector<1x1x1xf32>
    %cst_13 = arith.constant 8.000000e+00 : f32
    %37 = arith.divf %36, %cst_13 : f32
    %c0_14 = arith.constant 0 : index
    %c0_15 = arith.constant 0 : index
    %38 = memref.load %arg2[%c0_14, %c0_15] : memref<1x1xf32, #tpu.memory_space<smem>>
    memref.store %37, %arg2[%c0_14, %c0_15] : memref<1x1xf32, #tpu.memory_space<smem>>
    return
  }
}

</mosaic_0001>

<llo_original>
// kernel: tpu_custom_call.1
$region0: #{tpu_custom_call.1}
  #allocation0 [shape = 'u32[]', space=smem, size = 0x4, offset = 0x4, fixed_abs, tag = 'smem constant byte address 0x4 - core index']
  #allocation1 [shape = 'u32[72,128]{1,0:T(1,128)}', space=vmem, size = 0x9000, scoped, tag = 'internal scratch']
  %s0 = inlined_call_operand.hbm [shape: f32[8,8], index: 0, kind: input, shape index: {}]
  %s1 = inlined_call_operand.hbm [shape: f32[8,32], index: 1, kind: input, shape index: {}]
  %s2 = inlined_call_operand.hbm [shape: f32[1,1], index: 2, kind: output, shape index: {}]
  %s3 = sld [smem:[#allocation0]]
  $region26: #{tpu_custom_call.1} parent=0
    _
  %s5 = ssub.s32 1, %s3
  %s6 = scalar_select 0, %s5, %s3
  $region1: #{tpu_custom_call.1} parent=0
    #allocation2 [shape = 'u8[4096]{0}', space=vmem, size = 0x1000, scoped, tag = 'input window, operand 0, single buffered']
    #allocation3 [shape = 's32[1]{0}', space=sflag, size = 0x4, scoped, tag = 'scoped memory for tpu_custom_call.1']
    #allocation4 [shape = 's32[1]{0}', space=sflag, size = 0x4, scoped, tag = 'scoped memory for tpu_custom_call.1']
    #allocation5 [shape = 'u8[4096]{0}', space=vmem, size = 0x1000, scoped, tag = 'input window, operand 1, single buffered']
    #allocation6 [shape = 's32[1]{0}', space=sflag, size = 0x4, scoped, tag = 'scoped memory for tpu_custom_call.1']
    #allocation7 [shape = 'u8[512]{0}', space=smem, size = 0x200, scoped, tag = 'output window, operand 0, single buffered']
    %7 = vsyncpa [#allocation3], 0
    %8 = vsyncpa [#allocation6], 0
    %9 = vsyncpa [#allocation4], 0
    // Predicated region
    $region2: #{tpu_custom_call.1} parent=1 // pred_check
      _
    $region3: #{tpu_custom_call.1} parent=1 // pred_check_branch
      %11 = sbr.rel (0) target = $region5
    $region4: #{tpu_custom_call.1} parent=1 // pred_region
      %13 = vsyncadd [#allocation3], 0
      %s15 = sshll.u32 %s0, 4
      %s16 = int_to_ptr.hbm [resolvable:$true] %s15
      %s17 = sshll.u32 [#allocation2], 4
      %s18 = int_to_ptr.vmem [resolvable:$true] %s17
      %20 = dma.hbm_to_vmem [thread:$0]  %s16, 128, %s18, [#allocation3]
    $region5: #{tpu_custom_call.1} parent=1 // pred_fallthru
      _
    // Predicated region
    $region6: #{tpu_custom_call.1} parent=1 // pred_check
      _
    $region7: #{tpu_custom_call.1} parent=1 // pred_check_branch
      %22 = sbr.rel (0) target = $region9
    $region8: #{tpu_custom_call.1} parent=1 // pred_region
      %24 = vsyncadd [#allocation6], 0
      %s26 = sshll.u32 %s1, 4
      %s27 = int_to_ptr.hbm [resolvable:$true] %s26
      %s28 = sshll.u32 [#allocation5], 4
      %s29 = int_to_ptr.vmem [resolvable:$true] %s28
      %31 = dma.hbm_to_vmem [thread:$0]  %s27, 128, %s29, [#allocation6]
    $region9: #{tpu_custom_call.1} parent=1 // pred_fallthru
      _
    // Predicated region
    $region10: #{tpu_custom_call.1} parent=1 // pred_check
      _
    $region11: #{tpu_custom_call.1} parent=1 // pred_check_branch
      %33 = sbr.rel (0) target = $region13
    $region12: #{tpu_custom_call.1} parent=1 // pred_region
      %35 = dma.done [#allocation3], 128
    $region13: #{tpu_custom_call.1} parent=1 // pred_fallthru
      _
    // Predicated region
    $region14: #{tpu_custom_call.1} parent=1 // pred_check
      _
    $region15: #{tpu_custom_call.1} parent=1 // pred_check_branch
      %37 = sbr.rel (0) target = $region17
    $region16: #{tpu_custom_call.1} parent=1 // pred_region
      %39 = dma.done [#allocation6], 128
    $region17: #{tpu_custom_call.1} parent=1 // pred_fallthru
      _
    %v40 = vld [vmem:[#allocation2] sm:$0xff]
    %v41 = vld [vmem:[#allocation5] sm:$0xff]
    %v42 = vlaneseq
    %v43 = vshrl.u32 %v42, 7
    %v44 = vlaneseq
    %v45 = vand.u32 %v44, 127
    %vm46 = vcmp.eq.s32.totalorder %v43, %v45
    %v47 = vsel %vm46, 0.0, %v40
    %vm48 = vcmask 64512
    %v49 = vsel %vm48, %v47, 0.0
    %50 = vadd.xlane.f32.xlu0 %v49
    %v51 = vpop.xlane.xlu0 %50
    %v52 = vmul.f32 %v51, 0.125
    %vm53 = vcmask 261120
    %v54 = vsel %vm53, %v41, 0.0
    %55 = vadd.xlane.f32.xlu0 %v54
    %v56 = vpop.xlane.xlu0 %55
    %v57 = vrcp.pop %v56
    %v58 = vmul.f32 %v56, %v57
    %v59 = vsub.f32 1.0, %v58
    %v60 = vmul.f32 %v57, %v59
    %v61 = vadd.f32 %v57, %v60
    %vm62 = vweird.f32 %v56
    %vm63 = vweird.f32 %v57
    %vm64 = vmor %vm62, %vm63
    %v65 = vsel %vm64, %v57, %v61
    %v66 = vand.u32 2147483647, %v56
    %vm67 = vcmp.eq.f32.partialorder %v66, 8.507059e+37
    %v68 = vand.u32 %v56, 2147483648
    %v69 = vor.u32 1.1754944e-38, %v68
    %v70 = vsel %vm67, %v69, %v65
    %v71 = vmul.f32 %v70, 32.0
    %v72 = vsub.f32 1.0, %v71
    %vm73 = vcmask 7168
    %v74 = vsel %vm73, %v72, 0.0
    %75 = vadd.xlane.f32.xlu0 %v74
    %v76 = vpop.xlane.xlu0 %75
    %v77 = vrot.slane %v76, 4
    %v78 = vadd.f32 %v76, %v77
    %v79 = vrot.slane %v78, 2
    %v80 = vadd.f32 %v78, %v79
    %v81 = vrot.slane %v80, 1
    %v82 = vadd.f32 %v80, %v81
    %s83 = vtos %v82
    %v84 = vrcp.pop 8.0
    %v85 = vmul.f32 8.0, %v84
    %v86 = vsub.f32 1.0, %v85
    %v87 = vmul.f32 %v84, %v86
    %v88 = vadd.f32 %v84, %v87
    %vm89 = vweird.f32 %v84
    %v90 = vsel %vm89, %v84, %v88
    %s91 = vtos %v90
    %s92 = smul.f32 %s83, %s91
    %v93 = vsel %vm73, %v52, 0.0
    %94 = vadd.xlane.f32.xlu0 %v93
    %v95 = vpop.xlane.xlu0 %94
    %v96 = vrot.slane %v95, 4
    %v97 = vadd.f32 %v95, %v96
    %v98 = vrot.slane %v97, 2
    %v99 = vadd.f32 %v97, %v98
    %v100 = vrot.slane %v99, 1
    %v101 = vadd.f32 %v99, %v100
    %s102 = vtos %v101
    %v103 = vrcp.pop 8.0
    %v104 = vmul.f32 8.0, %v103
    %v105 = vsub.f32 1.0, %v104
    %v106 = vmul.f32 %v103, %v105
    %v107 = vadd.f32 %v103, %v106
    %vm108 = vweird.f32 %v103
    %v109 = vsel %vm108, %v103, %v107
    %s110 = vtos %v109
    %s111 = smul.f32 %s102, %s110
    %v112 = vstv %s111
    %v113 = vrcp.pop %v112
    %v114 = vmul.f32 %v112, %v113
    %v115 = vsub.f32 1.0, %v114
    %v116 = vmul.f32 %v113, %v115
    %v117 = vadd.f32 %v113, %v116
    %vm118 = vweird.f32 %v112
    %vm119 = vweird.f32 %v113
    %vm120 = vmor %vm118, %vm119
    %v121 = vsel %vm120, %v113, %v117
    %v122 = vand.u32 2147483647, %v112
    %vm123 = vcmp.eq.f32.partialorder %v122, 8.507059e+37
    %v124 = vand.u32 %v112, 2147483648
    %v125 = vor.u32 1.1754944e-38, %v124
    %v126 = vsel %vm123, %v125, %v121
    %s127 = vtos %v126
    %s128 = smul.f32 %s92, %s127
    %v129 = vstv %s128
    %v130 = vmul.f32 %v129, %v52
    %v131 = vsub.f32 %v72, %v130
    %v132 = vmul.f32 %v131, %v131
    %v133 = vsel %vm73, %v132, 0.0
    %134 = vadd.xlane.f32.xlu0 %v133
    %v135 = vpop.xlane.xlu0 %134
    %v136 = vrot.slane %v135, 4
    %v137 = vadd.f32 %v135, %v136
    %v138 = vrot.slane %v137, 2
    %v139 = vadd.f32 %v137, %v138
    %v140 = vrot.slane %v139, 1
    %v141 = vadd.f32 %v139, %v140
    %s142 = vtos %v141
    %v143 = vrcp.pop 8.0
    %v144 = vmul.f32 8.0, %v143
    %v145 = vsub.f32 1.0, %v144
    %v146 = vmul.f32 %v143, %v145
    %v147 = vadd.f32 %v143, %v146
    %vm148 = vweird.f32 %v143
    %v149 = vsel %vm148, %v143, %v147
    %s150 = vtos %v149
    %s151 = smul.f32 %s142, %s150
    %s152 = scalar_lea.smem [#allocation7], 0
    %153 = sst [smem:[%s152]] %s151
    // Predicated region
    $region18: #{tpu_custom_call.1} parent=1 // pred_check
      _
    $region19: #{tpu_custom_call.1} parent=1 // pred_check_branch
      %155 = sbr.rel (0) target = $region21
    $region20: #{tpu_custom_call.1} parent=1 // pred_region
      %157 = vsyncadd [#allocation4], 0
      %s159 = sshll.u32 %s2, 4
      %s160 = int_to_ptr.hbm [resolvable:$true] %s159
      %162 = dma.smem_to_hbm [#allocation7], 16, %s160, [#allocation4]
    $region21: #{tpu_custom_call.1} parent=1 // pred_fallthru
      _
    // Predicated region
    $region22: #{tpu_custom_call.1} parent=1 // pred_check
      _
    $region23: #{tpu_custom_call.1} parent=1 // pred_check_branch
      %164 = sbr.rel (0) target = $region25
    $region24: #{tpu_custom_call.1} parent=1 // pred_region
      %166 = dma.done [#allocation4], 16
    $region25: #{tpu_custom_call.1} parent=1 // pred_fallthru
      _
    %167 = sfence
    %168 = vsyncpa [#allocation3], 1
    %169 = vsyncpa [#allocation6], 1
    %170 = vsyncpa [#allocation4], 1

</llo_original>
